<compile_context>
chip_gen: v6e
topology: v6e:2x2x1
jax: 0.10.0
libtpu: 0.0.40
codegen_flags: <defaults>
</compile_context>

<pallas_src>
import functools

import jax
import jax.numpy as jnp
from jax.experimental import pallas as pl
from jax.experimental.pallas import tpu as pltpu


def _sigmoid(x):
    # 0.5*(tanh(0.5*x)+1): one EUP transcendental + cheap VPU mul/add,
    # mathematically identical to 1/(1+exp(-x)).
    return 0.5 * (jnp.tanh(0.5 * x) + 1.0)


def mlp_kernel(x_ref, w1_ref, b1_ref, w2_ref, b2_ref, w3_ref, b3_ref, o_ref,
               *, n_out, act_dtype):
    # layer 1: (TM, F)bf16 @ (F, 128)bf16 -> f32 acc; bias + sigmoid in act_dtype
    x = x_ref[...].astype(jnp.bfloat16)            # in-kernel cast; x tile read as f32
    h1 = jnp.dot(x, w1_ref[...], preferred_element_type=jnp.float32)
    h1 = _sigmoid(h1.astype(act_dtype) + b1_ref[...].astype(act_dtype))
    # layer 2: (TM, 128) @ (128, 512)
    h2 = jnp.dot(h1.astype(jnp.bfloat16), w2_ref[...],
                 preferred_element_type=jnp.float32)
    h2 = _sigmoid(h2.astype(act_dtype) + b2_ref[...].astype(act_dtype))
    # final layer: lane-padded (512, 128) weight keeps the MXU tile clean; only the
    # first n_out lanes are real.  Bias + sigmoid + store stay f32 and lane-narrow,
    # so the HBM writeback is exactly the true (TM, n_out) result.
    logits = jnp.dot(h2.astype(jnp.bfloat16), w3_ref[...],
                     preferred_element_type=jnp.float32)
    o_ref[...] = _sigmoid(logits[:, :n_out] + b3_ref[...]).astype(o_ref.dtype)


def _default_act_dtype():
    # bf16 VPU/EUP exists on v6e and newer; keep f32 activations on v5e and older.
    try:
        kind = jax.devices()[0].device_kind.lower()
    except Exception:
        return jnp.float32
    if any(tag in kind for tag in ("v6", "v7", "tpu7")):
        return jnp.bfloat16
    return jnp.float32


def prepare_params(w1, b1, w2, b2, w3, b3, *, n_pad=128):
    """One-time weight prep (hoisted out of the per-call path): lane-pad the final
    layer weight to a full 128-lane MXU tile and cast weights to bf16."""
    h2, n_out = w3.shape
    w3p = jnp.zeros((h2, n_pad), w3.dtype).at[:, :n_out].set(w3)
    return (w1.astype(jnp.bfloat16), b1,
            w2.astype(jnp.bfloat16), b2,
            w3p.astype(jnp.bfloat16), b3)


def binary_classification_forward(x, params, *, tm=1024, act_dtype=None):
    """y = sigmoid(sigmoid(sigmoid(x@w1+b1)@w2+b2)@w3+b3); params from prepare_params."""
    w1b, b1, w2b, b2, w3b, b3 = params
    if act_dtype is None:
        act_dtype = _default_act_dtype()

    B, F = x.shape
    H1 = w1b.shape[1]
    H2 = w2b.shape[1]
    N_PAD = w3b.shape[1]
    n_out = b3.shape[1]

    # Batch tiling: round B up to the 8-row sublane multiple; pick TM so the grid
    # has >= 2 steps whenever there is more than one minimal tile (keeps both v7x
    # TensorCores busy), capped at `tm`.
    b8 = max(8, pl.cdiv(B, 8) * 8)
    if b8 <= 8:
        TM = 8
    else:
        TM = min(tm, max(8, (b8 // 2) // 8 * 8))
    B_pad = pl.cdiv(b8, TM) * TM
    if B_pad != B:
        # Padded rows compute garbage and are sliced off below; never consumed.
        x = jnp.zeros((B_pad, F), x.dtype).at[:B, :].set(x)

    const = lambda i: (0, 0)  # weights/biases stay resident across the batch grid
    kernel = functools.partial(mlp_kernel, n_out=n_out, act_dtype=act_dtype)

    out = pl.pallas_call(
        kernel,
        out_shape=jax.ShapeDtypeStruct((B_pad, n_out), jnp.float32),
        grid=(B_pad // TM,),
        in_specs=[
            pl.BlockSpec((TM, F), lambda i: (i, 0)),
            pl.BlockSpec((F, H1), const),
            pl.BlockSpec((1, H1), const),
            pl.BlockSpec((H1, H2), const),
            pl.BlockSpec((1, H2), const),
            pl.BlockSpec((H2, N_PAD), const),
            pl.BlockSpec((1, n_out), const),
        ],
        out_specs=pl.BlockSpec((TM, n_out), lambda i: (i, 0)),
        compiler_params=pltpu.CompilerParams(
            dimension_semantics=("parallel",)),
    )(x, w1b, b1, w2b, b2, w3b, b3)

    return out[:B] if B_pad != B else out


def init_linear(key, in_features, out_features):
    """Deterministic init mimicking nn.Linear default (uniform +/- 1/sqrt(in))."""
    kw, kb = jax.random.split(key)
    bound = 1.0 / (in_features ** 0.5)
    # stored (in, out) so the kernel computes x @ W + b (== PyTorch x @ W_t.T + b)
    w = jax.random.uniform(kw, (in_features, out_features), jnp.float32,
                           minval=-bound, maxval=bound)
    b = jax.random.uniform(kb, (1, out_features), jnp.float32,
                           minval=-bound, maxval=bound)
    return w, b


def reference_forward(x, w1, b1, w2, b2, w3, b3):
    h1 = jax.nn.sigmoid(x @ w1 + b1)
    h2 = jax.nn.sigmoid(h1 @ w2 + b2)
    return jax.nn.sigmoid(h2 @ w3 + b3)


if __name__ == "__main__":
    key = jax.random.PRNGKey(0)
    k_x, k1, k2, k3 = jax.random.split(key, 4)

    batch = 8
    in_feature = 32

    x = jax.random.normal(k_x, (batch, in_feature), jnp.float32)
    w1, b1 = init_linear(k1, in_feature, 128)
    w2, b2 = init_linear(k2, 128, 512)
    w3, b3 = init_linear(k3, 512, 2)

    params = prepare_params(w1, b1, w2, b2, w3, b3)
    out = binary_classification_forward(x, params)
    out = jax.block_until_ready(out)

    ref = reference_forward(x, w1, b1, w2, b2, w3, b3)
    assert out.shape == (batch, 2)
    # bf16 matmul inputs (f32 accumulation) -> loosen tolerance vs. f32 reference.
    assert jnp.allclose(out, ref, atol=2e-2, rtol=2e-2), \
        f"max abs err {float(jnp.max(jnp.abs(out - ref)))}"

    print("KERNEL_OK")
</pallas_src>

<mosaic_0001>
module attributes {stable_mosaic.version = 11 : i64} {
  func.func @mlp_kernel(%arg0: i32, %arg1: memref<8x32xf32, #tpu.memory_space<vmem>>, %arg2: memref<32x128xbf16, #tpu.memory_space<vmem>>, %arg3: memref<1x128xf32, #tpu.memory_space<vmem>>, %arg4: memref<128x512xbf16, #tpu.memory_space<vmem>>, %arg5: memref<1x512xf32, #tpu.memory_space<vmem>>, %arg6: memref<512x128xbf16, #tpu.memory_space<vmem>>, %arg7: memref<1x2xf32, #tpu.memory_space<vmem>>, %arg8: memref<8x2xf32, #tpu.memory_space<vmem>>) attributes {dimension_semantics = [#tpu.dimension_semantics<parallel>], iteration_bounds = array<i64: 1>, scalar_prefetch = 0 : i64, scratch_operands = 0 : i64, tpu.core_type = #tpu.core_type<tc>, window_params = [{transform_indices = @transform_0, window_bounds = array<i64: 8, 32>}, {pipeline_mode = #tpu.pipeline_mode<synchronous>, transform_indices = @transform_1, window_bounds = array<i64: 32, 128>}, {pipeline_mode = #tpu.pipeline_mode<synchronous>, transform_indices = @transform_2, window_bounds = array<i64: 1, 128>}, {pipeline_mode = #tpu.pipeline_mode<synchronous>, transform_indices = @transform_3, window_bounds = array<i64: 128, 512>}, {pipeline_mode = #tpu.pipeline_mode<synchronous>, transform_indices = @transform_4, window_bounds = array<i64: 1, 512>}, {pipeline_mode = #tpu.pipeline_mode<synchronous>, transform_indices = @transform_5, window_bounds = array<i64: 512, 128>}, {pipeline_mode = #tpu.pipeline_mode<synchronous>, transform_indices = @transform_6, window_bounds = array<i64: 1, 2>}, {transform_indices = @transform_7, window_bounds = array<i64: 8, 2>}]} {
    %c0 = arith.constant 0 : index
    %c0_0 = arith.constant 0 : index
    %0 = vector.load %arg1[%c0, %c0_0] : memref<8x32xf32, #tpu.memory_space<vmem>>, vector<8x32xf32>
    %1 = arith.truncf %0 : vector<8x32xf32> to vector<8x32xbf16>
    %c0_1 = arith.constant 0 : index
    %c0_2 = arith.constant 0 : index
    %2 = vector.load %arg2[%c0_1, %c0_2] : memref<32x128xbf16, #tpu.memory_space<vmem>>, vector<32x128xbf16>
    %cst = arith.constant dense<0.000000e+00> : vector<8x128xf32>
    %3 = tpu.matmul %1, %2, %cst {dimension_numbers = #tpu.dot_dimension_numbers<[1], [0], [0], [1], [0, 0, 1, 1], [], []>} : vector<8x32xbf16>, vector<32x128xbf16>, vector<8x128xf32> -> vector<8x128xf32>
    %c0_3 = arith.constant 0 : index
    %c0_4 = arith.constant 0 : index
    %4 = vector.load %arg3[%c0_3, %c0_4] : memref<1x128xf32, #tpu.memory_space<vmem>>, vector<1x128xf32>
    %5 = vector.broadcast %4 : vector<1x128xf32> to vector<8x128xf32>
    %6 = arith.addf %3, %5 : vector<8x128xf32>
    %cst_5 = arith.constant 5.000000e-01 : f32
    %7 = vector.broadcast %cst_5 : f32 to vector<8x128xf32>
    %8 = arith.mulf %7, %6 : vector<8x128xf32>
    %9 = math.tanh %8 : vector<8x128xf32>
    %cst_6 = arith.constant 1.000000e+00 : f32
    %10 = vector.broadcast %cst_6 : f32 to vector<8x128xf32>
    %11 = arith.addf %9, %10 : vector<8x128xf32>
    %cst_7 = arith.constant 5.000000e-01 : f32
    %12 = vector.broadcast %cst_7 : f32 to vector<8x128xf32>
    %13 = arith.mulf %12, %11 : vector<8x128xf32>
    %14 = arith.truncf %13 : vector<8x128xf32> to vector<8x128xbf16>
    %c0_8 = arith.constant 0 : index
    %c0_9 = arith.constant 0 : index
    %15 = vector.load %arg4[%c0_8, %c0_9] : memref<128x512xbf16, #tpu.memory_space<vmem>>, vector<128x512xbf16>
    %cst_10 = arith.constant dense<0.000000e+00> : vector<8x512xf32>
    %16 = tpu.matmul %14, %15, %cst_10 {dimension_numbers = #tpu.dot_dimension_numbers<[1], [0], [0], [1], [0, 0, 1, 1], [], []>} : vector<8x128xbf16>, vector<128x512xbf16>, vector<8x512xf32> -> vector<8x512xf32>
    %c0_11 = arith.constant 0 : index
    %c0_12 = arith.constant 0 : index
    %17 = vector.load %arg5[%c0_11, %c0_12] : memref<1x512xf32, #tpu.memory_space<vmem>>, vector<1x512xf32>
    %18 = vector.broadcast %17 : vector<1x512xf32> to vector<8x512xf32>
    %19 = arith.addf %16, %18 : vector<8x512xf32>
    %cst_13 = arith.constant 5.000000e-01 : f32
    %20 = vector.broadcast %cst_13 : f32 to vector<8x512xf32>
    %21 = arith.mulf %20, %19 : vector<8x512xf32>
    %22 = math.tanh %21 : vector<8x512xf32>
    %cst_14 = arith.constant 1.000000e+00 : f32
    %23 = vector.broadcast %cst_14 : f32 to vector<8x512xf32>
    %24 = arith.addf %22, %23 : vector<8x512xf32>
    %cst_15 = arith.constant 5.000000e-01 : f32
    %25 = vector.broadcast %cst_15 : f32 to vector<8x512xf32>
    %26 = arith.mulf %25, %24 : vector<8x512xf32>
    %27 = arith.truncf %26 : vector<8x512xf32> to vector<8x512xbf16>
    %c0_16 = arith.constant 0 : index
    %c0_17 = arith.constant 0 : index
    %28 = vector.load %arg6[%c0_16, %c0_17] : memref<512x128xbf16, #tpu.memory_space<vmem>>, vector<512x128xbf16>
    %cst_18 = arith.constant dense<0.000000e+00> : vector<8x128xf32>
    %29 = tpu.matmul %27, %28, %cst_18 {dimension_numbers = #tpu.dot_dimension_numbers<[1], [0], [0], [1], [0, 0, 1, 1], [], []>} : vector<8x512xbf16>, vector<512x128xbf16>, vector<8x128xf32> -> vector<8x128xf32>
    %30 = vector.extract_strided_slice %29 {offsets = [0, 0], sizes = [8, 2], strides = [1, 1]} : vector<8x128xf32> to vector<8x2xf32>
    %c0_19 = arith.constant 0 : index
    %c0_20 = arith.constant 0 : index
    %31 = vector.load %arg7[%c0_19, %c0_20] : memref<1x2xf32, #tpu.memory_space<vmem>>, vector<1x2xf32>
    %32 = vector.broadcast %31 : vector<1x2xf32> to vector<8x2xf32>
    %33 = arith.addf %30, %32 : vector<8x2xf32>
    %cst_21 = arith.constant 5.000000e-01 : f32
    %34 = vector.broadcast %cst_21 : f32 to vector<8x2xf32>
    %35 = arith.mulf %34, %33 : vector<8x2xf32>
    %36 = math.tanh %35 : vector<8x2xf32>
    %cst_22 = arith.constant 1.000000e+00 : f32
    %37 = vector.broadcast %cst_22 : f32 to vector<8x2xf32>
    %38 = arith.addf %36, %37 : vector<8x2xf32>
    %cst_23 = arith.constant 5.000000e-01 : f32
    %39 = vector.broadcast %cst_23 : f32 to vector<8x2xf32>
    %40 = arith.mulf %39, %38 : vector<8x2xf32>
    %c0_24 = arith.constant 0 : index
    %c0_25 = arith.constant 0 : index
    %41 = vector.load %arg8[%c0_24, %c0_25] : memref<8x2xf32, #tpu.memory_space<vmem>>, vector<8x2xf32>
    tpu.vector_store %arg8[%c0_24, %c0_25], %40 {strides = array<i32>} : memref<8x2xf32, #tpu.memory_space<vmem>>, vector<8x2xf32>,
    return
  }
  func.func @transform_0(%arg0: i32) -> (i32, i32) {
    %c0_i32 = arith.constant 0 : i32
    %c0_i32_0 = arith.constant 0 : i32
    return %arg0, %c0_i32 : i32, i32
  }
  func.func @transform_1(%arg0: i32) -> (i32, i32) {
    %c0_i32 = arith.constant 0 : i32
    %c0_i32_0 = arith.constant 0 : i32
    %c0_i32_1 = arith.constant 0 : i32
    return %c0_i32, %c0_i32_0 : i32, i32
  }
  func.func @transform_2(%arg0: i32) -> (i32, i32) {
    %c0_i32 = arith.constant 0 : i32
    %c0_i32_0 = arith.constant 0 : i32
    %c0_i32_1 = arith.constant 0 : i32
    return %c0_i32, %c0_i32_0 : i32, i32
  }
  func.func @transform_3(%arg0: i32) -> (i32, i32) {
    %c0_i32 = arith.constant 0 : i32
    %c0_i32_0 = arith.constant 0 : i32
    %c0_i32_1 = arith.constant 0 : i32
    return %c0_i32, %c0_i32_0 : i32, i32
  }
  func.func @transform_4(%arg0: i32) -> (i32, i32) {
    %c0_i32 = arith.constant 0 : i32
    %c0_i32_0 = arith.constant 0 : i32
    %c0_i32_1 = arith.constant 0 : i32
    return %c0_i32, %c0_i32_0 : i32, i32
  }
  func.func @transform_5(%arg0: i32) -> (i32, i32) {
    %c0_i32 = arith.constant 0 : i32
    %c0_i32_0 = arith.constant 0 : i32
    %c0_i32_1 = arith.constant 0 : i32
    return %c0_i32, %c0_i32_0 : i32, i32
  }
  func.func @transform_6(%arg0: i32) -> (i32, i32) {
    %c0_i32 = arith.constant 0 : i32
    %c0_i32_0 = arith.constant 0 : i32
    %c0_i32_1 = arith.constant 0 : i32
    return %c0_i32, %c0_i32_0 : i32, i32
  }
  func.func @transform_7(%arg0: i32) -> (i32, i32) {
    %c0_i32 = arith.constant 0 : i32
    %c0_i32_0 = arith.constant 0 : i32
    return %arg0, %c0_i32 : i32, i32
  }
}

</mosaic_0001>

<llo_original>
// kernel: tpu_custom_call.1
$region0: #{tpu_custom_call.1}
  #allocation0 [shape = 'u32[]', space=smem, size = 0x4, offset = 0x4, fixed_abs, tag = 'smem constant byte address 0x4 - core index']
  #allocation1 [shape = 'u32[144,128]{1,0:T(1,128)}', space=vmem, size = 0x12000, scoped, tag = 'internal scratch']
  %s0 = inlined_call_operand.hbm [shape: f32[8,32], index: 0, kind: input, shape index: {}]
  %s1 = inlined_call_operand.hbm [shape: bf16[32,128], index: 1, kind: input, shape index: {}]
  %s2 = inlined_call_operand.vmem [shape: f32[1,128], index: 2, kind: input, shape index: {}]
  %s3 = inlined_call_operand.hbm [shape: bf16[128,512], index: 3, kind: input, shape index: {}]
  %s4 = inlined_call_operand.vmem [shape: f32[1,512], index: 4, kind: input, shape index: {}]
  %s5 = inlined_call_operand.hbm [shape: bf16[512,128], index: 5, kind: input, shape index: {}]
  %s6 = inlined_call_operand.vmem [shape: f32[1,2], index: 6, kind: input, shape index: {}]
  %s7 = inlined_call_operand.vmem [shape: f32[8,2], index: 7, kind: output, shape index: {}]
  %s8 = sld [smem:[#allocation0]]
  $region54: #{tpu_custom_call.1} parent=0
    _
  %s10 = ssub.s32 1, %s8
  %s11 = scalar_select 0, %s10, %s8
  $region1: #{tpu_custom_call.1} parent=0
    #allocation2 [shape = 'u8[4096]{0}', space=vmem, size = 0x1000, scoped, tag = 'input window, operand 0, single buffered']
    #allocation3 [shape = 's32[1]{0}', space=sflag, size = 0x4, scoped, tag = 'scoped memory for tpu_custom_call.1']
    #allocation4 [shape = 'u8[8192]{0}', space=vmem, size = 0x2000, scoped, tag = 'input window, operand 1, single buffered']
    #allocation5 [shape = 's32[1]{0}', space=sflag, size = 0x4, scoped, tag = 'scoped memory for tpu_custom_call.1']
    #allocation6 [shape = 'u8[131072]{0}', space=vmem, size = 0x20000, scoped, tag = 'input window, operand 3, single buffered']
    #allocation7 [shape = 'u8[131072]{0}', space=vmem, size = 0x20000, scoped, tag = 'input window, operand 5, single buffered']
    #allocation8 [shape = 's32[1]{0}', space=sflag, size = 0x4, scoped, tag = 'scoped memory for tpu_custom_call.1']
    %12 = vsyncpa [#allocation3], 0
    %13 = vsyncpa [#allocation5], 0
    %14 = vsyncpa [#allocation8], 0
    // Predicated region
    $region2: #{tpu_custom_call.1} parent=1 // pred_check
      _
    $region3: #{tpu_custom_call.1} parent=1 // pred_check_branch
      %16 = sbr.rel (0) target = $region5
    $region4: #{tpu_custom_call.1} parent=1 // pred_region
      %s18 = ssub.s32 128, 128
      %19 = vsyncadd [#allocation3], %s18
      %s21 = sshll.u32 [#allocation2], 4
      %s22 = int_to_ptr.vmem [resolvable:$true] %s21
      %24 = dma.hbm_to_vmem [thread:$0]  %s0, 128, %s22, [#allocation3]
    $region5: #{tpu_custom_call.1} parent=1 // pred_fallthru
      _
    // Predicated region
    $region6: #{tpu_custom_call.1} parent=1 // pred_check
      _
    $region7: #{tpu_custom_call.1} parent=1 // pred_check_branch
      %26 = sbr.rel (0) target = $region9
    $region8: #{tpu_custom_call.1} parent=1 // pred_region
      %s28 = ssub.s32 256, 256
      %29 = vsyncadd [#allocation5], %s28
      %s30 = sshll.u32 [#allocation4], 4
      %s31 = int_to_ptr.vmem [resolvable:$true] %s30
      %36 = dma.hbm_to_vmem [thread:$0]  %s1, 256, %s31, [#allocation5], 64, 64, 4
    $region9: #{tpu_custom_call.1} parent=1 // pred_fallthru
      _
    // Predicated region
    $region10: #{tpu_custom_call.1} parent=1 // pred_check
      _
    $region11: #{tpu_custom_call.1} parent=1 // pred_check_branch
      %38 = sbr.rel (0) target = $region13
    $region12: #{tpu_custom_call.1} parent=1 // pred_region
      _
    $region13: #{tpu_custom_call.1} parent=1 // pred_fallthru
      _
    // Predicated region
    $region14: #{tpu_custom_call.1} parent=1 // pred_check
      _
    $region15: #{tpu_custom_call.1} parent=1 // pred_check_branch
      %40 = sbr.rel (0) target = $region17
    $region16: #{tpu_custom_call.1} parent=1 // pred_region
      %s42 = ssub.s32 4096, 4096
      %43 = vsyncadd [#allocation5], %s42
      %s44 = sshll.u32 [#allocation6], 4
      %s45 = int_to_ptr.vmem [resolvable:$true] %s44
      %50 = dma.hbm_to_vmem [thread:$0]  %s3, 4096, %s45, [#allocation5], 256, 256, 16
    $region17: #{tpu_custom_call.1} parent=1 // pred_fallthru
      _
    // Predicated region
    $region18: #{tpu_custom_call.1} parent=1 // pred_check
      _
    $region19: #{tpu_custom_call.1} parent=1 // pred_check_branch
      %52 = sbr.rel (0) target = $region21
    $region20: #{tpu_custom_call.1} parent=1 // pred_region
      _
    $region21: #{tpu_custom_call.1} parent=1 // pred_fallthru
      _
    // Predicated region
    $region22: #{tpu_custom_call.1} parent=1 // pred_check
      _
    $region23: #{tpu_custom_call.1} parent=1 // pred_check_branch
      %54 = sbr.rel (0) target = $region25
    $region24: #{tpu_custom_call.1} parent=1 // pred_region
      %s56 = ssub.s32 4096, 4096
      %57 = vsyncadd [#allocation8], %s56
      %s58 = sshll.u32 [#allocation7], 4
      %s59 = int_to_ptr.vmem [resolvable:$true] %s58
      %64 = dma.hbm_to_vmem [thread:$0]  %s5, 4096, %s59, [#allocation8], 64, 64, 4
    $region25: #{tpu_custom_call.1} parent=1 // pred_fallthru
      _
    // Predicated region
    $region26: #{tpu_custom_call.1} parent=1 // pred_check
      _
    $region27: #{tpu_custom_call.1} parent=1 // pred_check_branch
      %66 = sbr.rel (0) target = $region29
    $region28: #{tpu_custom_call.1} parent=1 // pred_region
      _
    $region29: #{tpu_custom_call.1} parent=1 // pred_fallthru
      _
    // Predicated region
    $region30: #{tpu_custom_call.1} parent=1 // pred_check
      _
    $region31: #{tpu_custom_call.1} parent=1 // pred_check_branch
      %68 = sbr.rel (0) target = $region33
    $region32: #{tpu_custom_call.1} parent=1 // pred_region
      %69 = dma.done [#allocation3], 128
    $region33: #{tpu_custom_call.1} parent=1 // pred_fallthru
      _
    // Predicated region
    $region34: #{tpu_custom_call.1} parent=1 // pred_check
      _
    $region35: #{tpu_custom_call.1} parent=1 // pred_check_branch
      %71 = sbr.rel (0) target = $region37
    $region36: #{tpu_custom_call.1} parent=1 // pred_region
      %72 = dma.done [#allocation5], 256
    $region37: #{tpu_custom_call.1} parent=1 // pred_fallthru
      _
    // Predicated region
    $region38: #{tpu_custom_call.1} parent=1 // pred_check
      _
    $region39: #{tpu_custom_call.1} parent=1 // pred_check_branch
      %74 = sbr.rel (0) target = $region41
    $region40: #{tpu_custom_call.1} parent=1 // pred_region
      %75 = dma.done [#allocation5], 4096
    $region41: #{tpu_custom_call.1} parent=1 // pred_fallthru
      _
    // Predicated region
    $region42: #{tpu_custom_call.1} parent=1 // pred_check
      _
    $region43: #{tpu_custom_call.1} parent=1 // pred_check_branch
      %77 = sbr.rel (0) target = $region45
    $region44: #{tpu_custom_call.1} parent=1 // pred_region
      %78 = dma.done [#allocation8], 4096
    $region45: #{tpu_custom_call.1} parent=1 // pred_fallthru
      _
    %v80 = vld [vmem:[#allocation2] sm:$0xff]
    %v81 = vpack.c.bf16 %v80, %v80
    %v82 = vld [vmem:[#allocation4] sm:$0xf]
    %v83 = vld [vmem:[#allocation4 + $0x4] sm:$0xf]
    %v84 = vld [vmem:[#allocation4 + $0x8] sm:$0xf]
    %v85 = vld [vmem:[#allocation4 + $0xc] sm:$0xf]
    %v86 = vld [vmem:[%s2] sm:$0x1]
    %v88 = vlaneseq
    %v89 = vshrl.u32 %v88, 7
    %v90 = vsub.s32 0, %v89
    %v91 = vrot.slane %v86, %v90
    %v97 = vunpack.c.l.b16 %v82
    %v98 = vunpack.c.l.b16 %v83
    %v99 = vunpack.c.l.b16 %v84
    %v100 = vunpack.c.l.b16 %v85
    %v101 = vpack.c.b16 %v98, %v97
    %v102 = vpack.c.b16 %v100, %v99
    %vm105 = vcmask 261120
    %v107 = vsel %vm105, %v81, 0
    %109 = vmatprep.subr.bf16.mxu0 0
    %110 = vmatpush1.bf16.msra.mxu0 0
    %111 = vmatprep.subr.bf16.mxu0 0
    %112 = vmatpush1.bf16.msra.mxu0 0
    %113 = vmatprep.subr.bf16.mxu0 0
    %114 = vmatpush1.bf16.msra.mxu0 0
    %115 = vmatprep.subr.bf16.mxu0 0
    %116 = vmatpush1.bf16.msra.mxu0 0
    %117 = vmatprep.subr.bf16.mxu0 0
    %118 = vmatpush1.bf16.msra.mxu0 0
    %119 = vmatprep.subr.bf16.mxu0 0
    %120 = vmatpush1.bf16.msra.mxu0 0
    %121 = vmatprep.subr.bf16.mxu0 0
    %122 = vmatpush1.bf16.msra.mxu0 %v102
    %123 = vmatprep.subr.bf16.mxu0 0
    %124 = vmatpush1.bf16.msra.mxu0 %v101
    %125 = vmatprep.subr.bf16.mxu0 0
    %126 = vmatpush2.bf16.msra.mxu0 0
    %127 = vmatprep.subr.bf16.mxu0 0
    %128 = vmatpush2.bf16.msra.mxu0 0
    %129 = vmatprep.subr.bf16.mxu0 0
    %130 = vmatpush2.bf16.msra.mxu0 0
    %131 = vmatprep.subr.bf16.mxu0 0
    %132 = vmatpush2.bf16.msra.mxu0 0
    %133 = vmatprep.subr.bf16.mxu0 0
    %134 = vmatpush2.bf16.msra.mxu0 0
    %135 = vmatprep.subr.bf16.mxu0 0
    %136 = vmatpush2.bf16.msra.mxu0 0
    %137 = vmatprep.subr.bf16.mxu0 0
    %138 = vmatpush2.bf16.msra.mxu0 0
    %139 = vmatprep.subr.bf16.mxu0 0
    %140 = vmatpush2.bf16.msra.mxu0 0
    %141 = vmatprep.mubr.bf16.mxu0 0
    %142 = vmatmul.mubr.bf16.gmra.mxu0 %v107
    %v143 = vpop.f32.mrf.mxu0
    %v144 = vadd.f32 %v91, %v143
    %v145 = vpop.f32.mrf.mxu0
    %v146 = vpop.f32.mrf.mxu0
    %v147 = vpop.f32.mrf.mxu0
    %148 = vdwg.mxu0
    %v149 = vmul.f32 %v144, 0.5
    %v150 = vtanh.pop %v149
    %v151 = vadd.f32 %v150, 1.0
    %v152 = vmul.f32 %v151, 0.5
    %v153 = vpack.c.bf16 %v152, %v152
    %v154 = vld [vmem:[#allocation6] sm:$0xff]
    %v155 = vld [vmem:[#allocation6 + $0x8] sm:$0xff]
    %v156 = vld [vmem:[#allocation6 + $0x10] sm:$0xff]
    %v157 = vld [vmem:[#allocation6 + $0x18] sm:$0xff]
    %v158 = vld [vmem:[#allocation6 + $0x20] sm:$0xff]
    %v159 = vld [vmem:[#allocation6 + $0x28] sm:$0xff]
    %v160 = vld [vmem:[#allocation6 + $0x30] sm:$0xff]
    %v161 = vld [vmem:[#allocation6 + $0x38] sm:$0xff]
    %v162 = vld [vmem:[#allocation6 + $0x40] sm:$0xff]
    %v163 = vld [vmem:[#allocation6 + $0x48] sm:$0xff]
    %v164 = vld [vmem:[#allocation6 + $0x50] sm:$0xff]
    %v165 = vld [vmem:[#allocation6 + $0x58] sm:$0xff]
    %v166 = vld [vmem:[#allocation6 + $0x60] sm:$0xff]
    %v167 = vld [vmem:[#allocation6 + $0x68] sm:$0xff]
    %v168 = vld [vmem:[#allocation6 + $0x70] sm:$0xff]
    %v169 = vld [vmem:[#allocation6 + $0x78] sm:$0xff]
    %v170 = vld [vmem:[#allocation6 + $0x80] sm:$0xff]
    %v171 = vld [vmem:[#allocation6 + $0x88] sm:$0xff]
    %v172 = vld [vmem:[#allocation6 + $0x90] sm:$0xff]
    %v173 = vld [vmem:[#allocation6 + $0x98] sm:$0xff]
    %v174 = vld [vmem:[#allocation6 + $0xa0] sm:$0xff]
    %v175 = vld [vmem:[#allocation6 + $0xa8] sm:$0xff]
    %v176 = vld [vmem:[#allocation6 + $0xb0] sm:$0xff]
    %v177 = vld [vmem:[#allocation6 + $0xb8] sm:$0xff]
    %v178 = vld [vmem:[#allocation6 + $0xc0] sm:$0xff]
    %v179 = vld [vmem:[#allocation6 + $0xc8] sm:$0xff]
    %v180 = vld [vmem:[#allocation6 + $0xd0] sm:$0xff]
    %v181 = vld [vmem:[#allocation6 + $0xd8] sm:$0xff]
    %v182 = vld [vmem:[#allocation6 + $0xe0] sm:$0xff]
    %v183 = vld [vmem:[#allocation6 + $0xe8] sm:$0xff]
    %v184 = vld [vmem:[#allocation6 + $0xf0] sm:$0xff]
    %v185 = vld [vmem:[#allocation6 + $0xf8] sm:$0xff]
    %v186 = vld [vmem:[%s4] sm:$0xf]
    %v188 = vlaneseq
    %v189 = vshrl.u32 %v188, 7
    %v190 = vsub.s32 0, %v189
    %v191 = vrot.slane %v186, %v190
    %v192 = vlaneseq
    %v193 = vshrl.u32 %v192, 7
    %v194 = vsub.s32 1, %v193
    %v195 = vrot.slane %v186, %v194
    %v196 = vlaneseq
    %v197 = vshrl.u32 %v196, 7
    %v198 = vsub.s32 2, %v197
    %v199 = vrot.slane %v186, %v198
    %v200 = vlaneseq
    %v201 = vshrl.u32 %v200, 7
    %v202 = vsub.s32 3, %v201
    %v203 = vrot.slane %v186, %v202
    %v240 = vunpack.c.l.b16 %v154
    %v241 = vunpack.c.h.b16 %v154
    %v242 = vunpack.c.l.b16 %v155
    %v243 = vunpack.c.h.b16 %v155
    %v244 = vunpack.c.l.b16 %v156
    %v245 = vunpack.c.h.b16 %v156
    %v246 = vunpack.c.l.b16 %v157
    %v247 = vunpack.c.h.b16 %v157
    %v248 = vunpack.c.l.b16 %v158
    %v249 = vunpack.c.h.b16 %v158
    %v250 = vunpack.c.l.b16 %v159
    %v251 = vunpack.c.h.b16 %v159
    %v252 = vunpack.c.l.b16 %v160
    %v253 = vunpack.c.h.b16 %v160
    %v254 = vunpack.c.l.b16 %v161
    %v255 = vunpack.c.h.b16 %v161
    %v256 = vunpack.c.l.b16 %v162
    %v257 = vunpack.c.h.b16 %v162
    %v258 = vunpack.c.l.b16 %v163
    %v259 = vunpack.c.h.b16 %v163
    %v260 = vunpack.c.l.b16 %v164
    %v261 = vunpack.c.h.b16 %v164
    %v262 = vunpack.c.l.b16 %v165
    %v263 = vunpack.c.h.b16 %v165
    %v264 = vunpack.c.l.b16 %v166
    %v265 = vunpack.c.h.b16 %v166
    %v266 = vunpack.c.l.b16 %v167
    %v267 = vunpack.c.h.b16 %v167
    %v268 = vunpack.c.l.b16 %v168
    %v269 = vunpack.c.h.b16 %v168
    %v270 = vunpack.c.l.b16 %v169
    %v271 = vunpack.c.h.b16 %v169
    %v272 = vunpack.c.l.b16 %v170
    %v273 = vunpack.c.h.b16 %v170
    %v274 = vunpack.c.l.b16 %v171
    %v275 = vunpack.c.h.b16 %v171
    %v276 = vunpack.c.l.b16 %v172
    %v277 = vunpack.c.h.b16 %v172
    %v278 = vunpack.c.l.b16 %v173
    %v279 = vunpack.c.h.b16 %v173
    %v280 = vunpack.c.l.b16 %v174
    %v281 = vunpack.c.h.b16 %v174
    %v282 = vunpack.c.l.b16 %v175
    %v283 = vunpack.c.h.b16 %v175
    %v284 = vunpack.c.l.b16 %v176
    %v285 = vunpack.c.h.b16 %v176
    %v286 = vunpack.c.l.b16 %v177
    %v287 = vunpack.c.h.b16 %v177
    %v288 = vunpack.c.l.b16 %v178
    %v289 = vunpack.c.h.b16 %v178
    %v290 = vunpack.c.l.b16 %v179
    %v291 = vunpack.c.h.b16 %v179
    %v292 = vunpack.c.l.b16 %v180
    %v293 = vunpack.c.h.b16 %v180
    %v294 = vunpack.c.l.b16 %v181
    %v295 = vunpack.c.h.b16 %v181
    %v296 = vunpack.c.l.b16 %v182
    %v297 = vunpack.c.h.b16 %v182
    %v298 = vunpack.c.l.b16 %v183
    %v299 = vunpack.c.h.b16 %v183
    %v300 = vunpack.c.l.b16 %v184
    %v301 = vunpack.c.h.b16 %v184
    %v302 = vunpack.c.l.b16 %v185
    %v303 = vunpack.c.h.b16 %v185
    %v304 = vpack.c.b16 %v244, %v240
    %v305 = vpack.c.b16 %v245, %v241
    %v306 = vpack.c.b16 %v246, %v242
    %v307 = vpack.c.b16 %v247, %v243
    %v308 = vpack.c.b16 %v252, %v248
    %v309 = vpack.c.b16 %v253, %v249
    %v310 = vpack.c.b16 %v254, %v250
    %v311 = vpack.c.b16 %v255, %v251
    %v312 = vpack.c.b16 %v260, %v256
    %v313 = vpack.c.b16 %v261, %v257
    %v314 = vpack.c.b16 %v262, %v258
    %v315 = vpack.c.b16 %v263, %v259
    %v316 = vpack.c.b16 %v268, %v264
    %v317 = vpack.c.b16 %v269, %v265
    %v318 = vpack.c.b16 %v270, %v266
    %v319 = vpack.c.b16 %v271, %v267
    %v320 = vpack.c.b16 %v276, %v272
    %v321 = vpack.c.b16 %v277, %v273
    %v322 = vpack.c.b16 %v278, %v274
    %v323 = vpack.c.b16 %v279, %v275
    %v324 = vpack.c.b16 %v284, %v280
    %v325 = vpack.c.b16 %v285, %v281
    %v326 = vpack.c.b16 %v286, %v282
    %v327 = vpack.c.b16 %v287, %v283
    %v328 = vpack.c.b16 %v292, %v288
    %v329 = vpack.c.b16 %v293, %v289
    %v330 = vpack.c.b16 %v294, %v290
    %v331 = vpack.c.b16 %v295, %v291
    %v332 = vpack.c.b16 %v300, %v296
    %v333 = vpack.c.b16 %v301, %v297
    %v334 = vpack.c.b16 %v302, %v298
    %v335 = vpack.c.b16 %v303, %v299
    %368 = vmatprep.subr.bf16.mxu0 %v333
    %369 = vmatpush1.bf16.msra.mxu0 %v332
    %370 = vmatprep.subr.bf16.mxu0 %v329
    %371 = vmatpush1.bf16.msra.mxu0 %v328
    %372 = vmatprep.subr.bf16.mxu0 %v325
    %373 = vmatpush1.bf16.msra.mxu0 %v324
    %374 = vmatprep.subr.bf16.mxu0 %v321
    %375 = vmatpush1.bf16.msra.mxu0 %v320
    %376 = vmatprep.subr.bf16.mxu0 %v317
    %377 = vmatpush1.bf16.msra.mxu0 %v316
    %378 = vmatprep.subr.bf16.mxu0 %v313
    %379 = vmatpush1.bf16.msra.mxu0 %v312
    %380 = vmatprep.subr.bf16.mxu0 %v309
    %381 = vmatpush1.bf16.msra.mxu0 %v308
    %382 = vmatprep.subr.bf16.mxu0 %v305
    %383 = vmatpush1.bf16.msra.mxu0 %v304
    %384 = vmatprep.subr.bf16.mxu0 0
    %385 = vmatpush2.bf16.msra.mxu0 0
    %386 = vmatprep.subr.bf16.mxu0 0
    %387 = vmatpush2.bf16.msra.mxu0 0
    %388 = vmatprep.subr.bf16.mxu0 0
    %389 = vmatpush2.bf16.msra.mxu0 0
    %390 = vmatprep.subr.bf16.mxu0 0
    %391 = vmatpush2.bf16.msra.mxu0 0
    %392 = vmatprep.subr.bf16.mxu0 0
    %393 = vmatpush2.bf16.msra.mxu0 0
    %394 = vmatprep.subr.bf16.mxu0 0
    %395 = vmatpush2.bf16.msra.mxu0 0
    %396 = vmatprep.subr.bf16.mxu0 0
    %397 = vmatpush2.bf16.msra.mxu0 0
    %398 = vmatprep.subr.bf16.mxu0 0
    %399 = vmatpush2.bf16.msra.mxu0 0
    %400 = vmatprep.mubr.bf16.mxu0 0
    %401 = vmatmul.mubr.bf16.gmra.mxu0 %v153
    %v402 = vpop.f32.mrf.mxu0
    %v403 = vadd.f32 %v191, %v402
    %v404 = vpop.f32.mrf.mxu0
    %v405 = vadd.f32 %v195, %v404
    %v406 = vpop.f32.mrf.mxu0
    %v407 = vpop.f32.mrf.mxu0
    %408 = vdwg.mxu0
    %409 = vmatprep.subr.bf16.mxu0 %v335
    %410 = vmatpush1.bf16.msra.mxu0 %v334
    %411 = vmatprep.subr.bf16.mxu0 %v331
    %412 = vmatpush1.bf16.msra.mxu0 %v330
    %413 = vmatprep.subr.bf16.mxu0 %v327
    %414 = vmatpush1.bf16.msra.mxu0 %v326
    %415 = vmatprep.subr.bf16.mxu0 %v323
    %416 = vmatpush1.bf16.msra.mxu0 %v322
    %417 = vmatprep.subr.bf16.mxu0 %v319
    %418 = vmatpush1.bf16.msra.mxu0 %v318
    %419 = vmatprep.subr.bf16.mxu0 %v315
    %420 = vmatpush1.bf16.msra.mxu0 %v314
    %421 = vmatprep.subr.bf16.mxu0 %v311
    %422 = vmatpush1.bf16.msra.mxu0 %v310
    %423 = vmatprep.subr.bf16.mxu0 %v307
    %424 = vmatpush1.bf16.msra.mxu0 %v306
    %425 = vmatprep.subr.bf16.mxu0 0
    %426 = vmatpush2.bf16.msra.mxu0 0
    %427 = vmatprep.subr.bf16.mxu0 0
    %428 = vmatpush2.bf16.msra.mxu0 0
    %429 = vmatprep.subr.bf16.mxu0 0
    %430 = vmatpush2.bf16.msra.mxu0 0
    %431 = vmatprep.subr.bf16.mxu0 0
    %432 = vmatpush2.bf16.msra.mxu0 0
    %433 = vmatprep.subr.bf16.mxu0 0
    %434 = vmatpush2.bf16.msra.mxu0 0
    %435 = vmatprep.subr.bf16.mxu0 0
    %436 = vmatpush2.bf16.msra.mxu0 0
    %437 = vmatprep.subr.bf16.mxu0 0
    %438 = vmatpush2.bf16.msra.mxu0 0
    %439 = vmatprep.subr.bf16.mxu0 0
    %440 = vmatpush2.bf16.msra.mxu0 0
    %441 = vmatprep.mubr.bf16.mxu0 0
    %442 = vmatmul.mubr.bf16.gmra.mxu0 %v153
    %v443 = vpop.f32.mrf.mxu0
    %v444 = vadd.f32 %v199, %v443
    %v445 = vpop.f32.mrf.mxu0
    %v446 = vadd.f32 %v203, %v445
    %v447 = vpop.f32.mrf.mxu0
    %v448 = vpop.f32.mrf.mxu0
    %449 = vdwg.mxu0
    %v450 = vmul.f32 %v403, 0.5
    %v451 = vmul.f32 %v405, 0.5
    %v452 = vmul.f32 %v444, 0.5
    %v453 = vmul.f32 %v446, 0.5
    %v454 = vtanh.pop %v450
    %v455 = vtanh.pop %v451
    %v456 = vtanh.pop %v452
    %v457 = vtanh.pop %v453
    %v458 = vadd.f32 %v454, 1.0
    %v459 = vadd.f32 %v455, 1.0
    %v460 = vadd.f32 %v456, 1.0
    %v461 = vadd.f32 %v457, 1.0
    %v462 = vmul.f32 %v458, 0.5
    %v463 = vmul.f32 %v459, 0.5
    %v464 = vmul.f32 %v460, 0.5
    %v465 = vmul.f32 %v461, 0.5
    %v466 = vpack.c.bf16 %v462, %v462
    %v467 = vpack.c.bf16 %v463, %v463
    %v468 = vpack.c.bf16 %v464, %v464
    %v469 = vpack.c.bf16 %v465, %v465
    %v470 = vld [vmem:[#allocation7] sm:$0xf]
    %v471 = vld [vmem:[#allocation7 + $0x4] sm:$0xf]
    %v472 = vld [vmem:[#allocation7 + $0x8] sm:$0xf]
    %v473 = vld [vmem:[#allocation7 + $0xc] sm:$0xf]
    %v474 = vld [vmem:[#allocation7 + $0x10] sm:$0xf]
    %v475 = vld [vmem:[#allocation7 + $0x14] sm:$0xf]
    %v476 = vld [vmem:[#allocation7 + $0x18] sm:$0xf]
    %v477 = vld [vmem:[#allocation7 + $0x1c] sm:$0xf]
    %v478 = vld [vmem:[#allocation7 + $0x20] sm:$0xf]
    %v479 = vld [vmem:[#allocation7 + $0x24] sm:$0xf]
    %v480 = vld [vmem:[#allocation7 + $0x28] sm:$0xf]
    %v481 = vld [vmem:[#allocation7 + $0x2c] sm:$0xf]
    %v482 = vld [vmem:[#allocation7 + $0x30] sm:$0xf]
    %v483 = vld [vmem:[#allocation7 + $0x34] sm:$0xf]
    %v484 = vld [vmem:[#allocation7 + $0x38] sm:$0xf]
    %v485 = vld [vmem:[#allocation7 + $0x3c] sm:$0xf]
    %v486 = vld [vmem:[#allocation7 + $0x40] sm:$0xf]
    %v487 = vld [vmem:[#allocation7 + $0x44] sm:$0xf]
    %v488 = vld [vmem:[#allocation7 + $0x48] sm:$0xf]
    %v489 = vld [vmem:[#allocation7 + $0x4c] sm:$0xf]
    %v490 = vld [vmem:[#allocation7 + $0x50] sm:$0xf]
    %v491 = vld [vmem:[#allocation7 + $0x54] sm:$0xf]
    %v492 = vld [vmem:[#allocation7 + $0x58] sm:$0xf]
    %v493 = vld [vmem:[#allocation7 + $0x5c] sm:$0xf]
    %v494 = vld [vmem:[#allocation7 + $0x60] sm:$0xf]
    %v495 = vld [vmem:[#allocation7 + $0x64] sm:$0xf]
    %v496 = vld [vmem:[#allocation7 + $0x68] sm:$0xf]
    %v497 = vld [vmem:[#allocation7 + $0x6c] sm:$0xf]
    %v498 = vld [vmem:[#allocation7 + $0x70] sm:$0xf]
    %v499 = vld [vmem:[#allocation7 + $0x74] sm:$0xf]
    %v500 = vld [vmem:[#allocation7 + $0x78] sm:$0xf]
    %v501 = vld [vmem:[#allocation7 + $0x7c] sm:$0xf]
    %v502 = vld [vmem:[#allocation7 + $0x80] sm:$0xf]
    %v503 = vld [vmem:[#allocation7 + $0x84] sm:$0xf]
    %v504 = vld [vmem:[#allocation7 + $0x88] sm:$0xf]
    %v505 = vld [vmem:[#allocation7 + $0x8c] sm:$0xf]
    %v506 = vld [vmem:[#allocation7 + $0x90] sm:$0xf]
    %v507 = vld [vmem:[#allocation7 + $0x94] sm:$0xf]
    %v508 = vld [vmem:[#allocation7 + $0x98] sm:$0xf]
    %v509 = vld [vmem:[#allocation7 + $0x9c] sm:$0xf]
    %v510 = vld [vmem:[#allocation7 + $0xa0] sm:$0xf]
    %v511 = vld [vmem:[#allocation7 + $0xa4] sm:$0xf]
    %v512 = vld [vmem:[#allocation7 + $0xa8] sm:$0xf]
    %v513 = vld [vmem:[#allocation7 + $0xac] sm:$0xf]
    %v514 = vld [vmem:[#allocation7 + $0xb0] sm:$0xf]
    %v515 = vld [vmem:[#allocation7 + $0xb4] sm:$0xf]
    %v516 = vld [vmem:[#allocation7 + $0xb8] sm:$0xf]
    %v517 = vld [vmem:[#allocation7 + $0xbc] sm:$0xf]
    %v518 = vld [vmem:[#allocation7 + $0xc0] sm:$0xf]
    %v519 = vld [vmem:[#allocation7 + $0xc4] sm:$0xf]
    %v520 = vld [vmem:[#allocation7 + $0xc8] sm:$0xf]
    %v521 = vld [vmem:[#allocation7 + $0xcc] sm:$0xf]
    %v522 = vld [vmem:[#allocation7 + $0xd0] sm:$0xf]
    %v523 = vld [vmem:[#allocation7 + $0xd4] sm:$0xf]
    %v524 = vld [vmem:[#allocation7 + $0xd8] sm:$0xf]
    %v525 = vld [vmem:[#allocation7 + $0xdc] sm:$0xf]
    %v526 = vld [vmem:[#allocation7 + $0xe0] sm:$0xf]
    %v527 = vld [vmem:[#allocation7 + $0xe4] sm:$0xf]
    %v528 = vld [vmem:[#allocation7 + $0xe8] sm:$0xf]
    %v529 = vld [vmem:[#allocation7 + $0xec] sm:$0xf]
    %v530 = vld [vmem:[#allocation7 + $0xf0] sm:$0xf]
    %v531 = vld [vmem:[#allocation7 + $0xf4] sm:$0xf]
    %v532 = vld [vmem:[#allocation7 + $0xf8] sm:$0xf]
    %v533 = vld [vmem:[#allocation7 + $0xfc] sm:$0xf]
    %v598 = vunpack.c.l.b16 %v470
    %v599 = vunpack.c.l.b16 %v471
    %v600 = vunpack.c.l.b16 %v472
    %v601 = vunpack.c.l.b16 %v473
    %v602 = vunpack.c.l.b16 %v474
    %v603 = vunpack.c.l.b16 %v475
    %v604 = vunpack.c.l.b16 %v476
    %v605 = vunpack.c.l.b16 %v477
    %v606 = vunpack.c.l.b16 %v478
    %v607 = vunpack.c.l.b16 %v479
    %v608 = vunpack.c.l.b16 %v480
    %v609 = vunpack.c.l.b16 %v481
    %v610 = vunpack.c.l.b16 %v482
    %v611 = vunpack.c.l.b16 %v483
    %v612 = vunpack.c.l.b16 %v484
    %v613 = vunpack.c.l.b16 %v485
    %v614 = vunpack.c.l.b16 %v486
    %v615 = vunpack.c.l.b16 %v487
    %v616 = vunpack.c.l.b16 %v488
    %v617 = vunpack.c.l.b16 %v489
    %v618 = vunpack.c.l.b16 %v490
    %v619 = vunpack.c.l.b16 %v491
    %v620 = vunpack.c.l.b16 %v492
    %v621 = vunpack.c.l.b16 %v493
    %v622 = vunpack.c.l.b16 %v494
    %v623 = vunpack.c.l.b16 %v495
    %v624 = vunpack.c.l.b16 %v496
    %v625 = vunpack.c.l.b16 %v497
    %v626 = vunpack.c.l.b16 %v498
    %v627 = vunpack.c.l.b16 %v499
    %v628 = vunpack.c.l.b16 %v500
    %v629 = vunpack.c.l.b16 %v501
    %v630 = vunpack.c.l.b16 %v502
    %v631 = vunpack.c.l.b16 %v503
    %v632 = vunpack.c.l.b16 %v504
    %v633 = vunpack.c.l.b16 %v505
    %v634 = vunpack.c.l.b16 %v506
    %v635 = vunpack.c.l.b16 %v507
    %v636 = vunpack.c.l.b16 %v508
    %v637 = vunpack.c.l.b16 %v509
    %v638 = vunpack.c.l.b16 %v510
    %v639 = vunpack.c.l.b16 %v511
    %v640 = vunpack.c.l.b16 %v512
    %v641 = vunpack.c.l.b16 %v513
    %v642 = vunpack.c.l.b16 %v514
    %v643 = vunpack.c.l.b16 %v515
    %v644 = vunpack.c.l.b16 %v516
    %v645 = vunpack.c.l.b16 %v517
    %v646 = vunpack.c.l.b16 %v518
    %v647 = vunpack.c.l.b16 %v519
    %v648 = vunpack.c.l.b16 %v520
    %v649 = vunpack.c.l.b16 %v521
    %v650 = vunpack.c.l.b16 %v522
    %v651 = vunpack.c.l.b16 %v523
    %v652 = vunpack.c.l.b16 %v524
    %v653 = vunpack.c.l.b16 %v525
    %v654 = vunpack.c.l.b16 %v526
    %v655 = vunpack.c.l.b16 %v527
    %v656 = vunpack.c.l.b16 %v528
    %v657 = vunpack.c.l.b16 %v529
    %v658 = vunpack.c.l.b16 %v530
    %v659 = vunpack.c.l.b16 %v531
    %v660 = vunpack.c.l.b16 %v532
    %v661 = vunpack.c.l.b16 %v533
    %v662 = vpack.c.b16 %v599, %v598
    %v663 = vpack.c.b16 %v601, %v600
    %v664 = vpack.c.b16 %v603, %v602
    %v665 = vpack.c.b16 %v605, %v604
    %v666 = vpack.c.b16 %v607, %v606
    %v667 = vpack.c.b16 %v609, %v608
    %v668 = vpack.c.b16 %v611, %v610
    %v669 = vpack.c.b16 %v613, %v612
    %v670 = vpack.c.b16 %v615, %v614
    %v671 = vpack.c.b16 %v617, %v616
    %v672 = vpack.c.b16 %v619, %v618
    %v673 = vpack.c.b16 %v621, %v620
    %v674 = vpack.c.b16 %v623, %v622
    %v675 = vpack.c.b16 %v625, %v624
    %v676 = vpack.c.b16 %v627, %v626
    %v677 = vpack.c.b16 %v629, %v628
    %v678 = vpack.c.b16 %v631, %v630
    %v679 = vpack.c.b16 %v633, %v632
    %v680 = vpack.c.b16 %v635, %v634
    %v681 = vpack.c.b16 %v637, %v636
    %v682 = vpack.c.b16 %v639, %v638
    %v683 = vpack.c.b16 %v641, %v640
    %v684 = vpack.c.b16 %v643, %v642
    %v685 = vpack.c.b16 %v645, %v644
    %v686 = vpack.c.b16 %v647, %v646
    %v687 = vpack.c.b16 %v649, %v648
    %v688 = vpack.c.b16 %v651, %v650
    %v689 = vpack.c.b16 %v653, %v652
    %v690 = vpack.c.b16 %v655, %v654
    %v691 = vpack.c.b16 %v657, %v656
    %v692 = vpack.c.b16 %v659, %v658
    %v693 = vpack.c.b16 %v661, %v660
    %726 = vmatprep.subr.bf16.mxu0 0
    %727 = vmatpush1.bf16.msra.mxu0 %v669
    %728 = vmatprep.subr.bf16.mxu0 0
    %729 = vmatpush1.bf16.msra.mxu0 %v668
    %730 = vmatprep.subr.bf16.mxu0 0
    %731 = vmatpush1.bf16.msra.mxu0 %v667
    %732 = vmatprep.subr.bf16.mxu0 0
    %733 = vmatpush1.bf16.msra.mxu0 %v666
    %734 = vmatprep.subr.bf16.mxu0 0
    %735 = vmatpush1.bf16.msra.mxu0 %v665
    %736 = vmatprep.subr.bf16.mxu0 0
    %737 = vmatpush1.bf16.msra.mxu0 %v664
    %738 = vmatprep.subr.bf16.mxu0 0
    %739 = vmatpush1.bf16.msra.mxu0 %v663
    %740 = vmatprep.subr.bf16.mxu0 0
    %741 = vmatpush1.bf16.msra.mxu0 %v662
    %742 = vmatprep.subr.bf16.mxu0 0
    %743 = vmatpush2.bf16.msra.mxu0 %v677
    %744 = vmatprep.subr.bf16.mxu0 0
    %745 = vmatpush2.bf16.msra.mxu0 %v676
    %746 = vmatprep.subr.bf16.mxu0 0
    %747 = vmatpush2.bf16.msra.mxu0 %v675
    %748 = vmatprep.subr.bf16.mxu0 0
    %749 = vmatpush2.bf16.msra.mxu0 %v674
    %750 = vmatprep.subr.bf16.mxu0 0
    %751 = vmatpush2.bf16.msra.mxu0 %v673
    %752 = vmatprep.subr.bf16.mxu0 0
    %753 = vmatpush2.bf16.msra.mxu0 %v672
    %754 = vmatprep.subr.bf16.mxu0 0
    %755 = vmatpush2.bf16.msra.mxu0 %v671
    %756 = vmatprep.subr.bf16.mxu0 0
    %757 = vmatpush2.bf16.msra.mxu0 %v670
    %758 = vmatprep.mubr.bf16.mxu0 %v467
    %759 = vmatmul.mubr.bf16.gmra.mxu0 %v466
    %v760 = vpop.f32.mrf.mxu0
    %v761 = vadd.f32 0.0, %v760
    %v762 = vpop.f32.mrf.mxu0
    %v763 = vpop.f32.mrf.mxu0
    %v764 = vpop.f32.mrf.mxu0
    %765 = vdwg.mxu0
    %766 = vmatprep.subr.bf16.mxu0 0
    %767 = vmatpush1.bf16.msra.mxu0 %v685
    %768 = vmatprep.subr.bf16.mxu0 0
    %769 = vmatpush1.bf16.msra.mxu0 %v684
    %770 = vmatprep.subr.bf16.mxu0 0
    %771 = vmatpush1.bf16.msra.mxu0 %v683
    %772 = vmatprep.subr.bf16.mxu0 0
    %773 = vmatpush1.bf16.msra.mxu0 %v682
    %774 = vmatprep.subr.bf16.mxu0 0
    %775 = vmatpush1.bf16.msra.mxu0 %v681
    %776 = vmatprep.subr.bf16.mxu0 0
    %777 = vmatpush1.bf16.msra.mxu0 %v680
    %778 = vmatprep.subr.bf16.mxu0 0
    %779 = vmatpush1.bf16.msra.mxu0 %v679
    %780 = vmatprep.subr.bf16.mxu0 0
    %781 = vmatpush1.bf16.msra.mxu0 %v678
    %782 = vmatprep.subr.bf16.mxu0 0
    %783 = vmatpush2.bf16.msra.mxu0 %v693
    %784 = vmatprep.subr.bf16.mxu0 0
    %785 = vmatpush2.bf16.msra.mxu0 %v692
    %786 = vmatprep.subr.bf16.mxu0 0
    %787 = vmatpush2.bf16.msra.mxu0 %v691
    %788 = vmatprep.subr.bf16.mxu0 0
    %789 = vmatpush2.bf16.msra.mxu0 %v690
    %790 = vmatprep.subr.bf16.mxu0 0
    %791 = vmatpush2.bf16.msra.mxu0 %v689
    %792 = vmatprep.subr.bf16.mxu0 0
    %793 = vmatpush2.bf16.msra.mxu0 %v688
    %794 = vmatprep.subr.bf16.mxu0 0
    %795 = vmatpush2.bf16.msra.mxu0 %v687
    %796 = vmatprep.subr.bf16.mxu0 0
    %797 = vmatpush2.bf16.msra.mxu0 %v686
    %798 = vmatprep.mubr.bf16.mxu0 %v469
    %799 = vmatmul.mubr.bf16.gmra.mxu0 %v468
    %v800 = vpop.f32.mrf.mxu0
    %v801 = vadd.f32 %v761, %v800
    %v802 = vpop.f32.mrf.mxu0
    %v803 = vpop.f32.mrf.mxu0
    %v804 = vpop.f32.mrf.mxu0
    %805 = vdwg.mxu0
    %v806 = vld [vmem:[%s6] sm:$0x1]
    %v808 = vlaneseq
    %v809 = vshrl.u32 %v808, 7
    %v810 = vsub.s32 0, %v809
    %v811 = vrot.slane %v806, %v810
    %v813 = vadd.f32 %v801, %v811
    %v814 = vmul.f32 %v813, 0.5
    %v815 = vtanh.pop %v814
    %v816 = vadd.f32 %v815, 1.0
    %v817 = vmul.f32 %v816, 0.5
    %vm818 = vcmask 15360
    %819 = vst.msk [vmem:[%s7] sm:$0xff] %vm818, %v817
    // Predicated region
    $region46: #{tpu_custom_call.1} parent=1 // pred_check
      _
    $region47: #{tpu_custom_call.1} parent=1 // pred_check_branch
      %821 = sbr.rel (0) target = $region49
    $region48: #{tpu_custom_call.1} parent=1 // pred_region
      _
    $region49: #{tpu_custom_call.1} parent=1 // pred_fallthru
      _
    // Predicated region
    $region50: #{tpu_custom_call.1} parent=1 // pred_check
      _
    $region51: #{tpu_custom_call.1} parent=1 // pred_check_branch
      %823 = sbr.rel (0) target = $region53
    $region52: #{tpu_custom_call.1} parent=1 // pred_region
      _
    $region53: #{tpu_custom_call.1} parent=1 // pred_fallthru
      _
    %824 = vsyncpa [#allocation3], 1
    %825 = vsyncpa [#allocation5], 1
    %826 = vsyncpa [#allocation8], 1

</llo_original>
